<compile_context>
chip_gen: v7x
topology: tpu7x:2x2x1
jax: 0.10.0
libtpu: 0.0.40
codegen_flags: <defaults>
</compile_context>

<pallas_src>
import functools

import jax
import jax.numpy as jnp
from jax.experimental import pallas as pl
from jax.experimental.pallas import tpu as pltpu


# ---------------------------------------------------------------------------
# Fused tiled matmul kernel:
#   out = relu?( diag(dis_rows) @ (A @ B) + bias * (dis_rows > 0) )
# A may be int8 (adjacency counts) and is cast to bf16 in VMEM.
# B may be held resident across the K grid axis (full-K block, pl.ds slice).
# ---------------------------------------------------------------------------
def _fused_matmul_kernel(a_ref, b_ref, dis_ref, bias_ref, o_ref, acc_ref, *,
                         tk, b_resident, cast_a, apply_relu):
    k = pl.program_id(2)

    @pl.when(k == 0)
    def _():
        acc_ref[...] = jnp.zeros_like(acc_ref)

    a = a_ref[...]
    if cast_a:
        # 1-byte adjacency stream from HBM; MXU still runs bf16 x bf16.
        a = a.astype(jnp.bfloat16)
    if b_resident:
        off = pl.multiple_of(k * tk, tk)
        b = b_ref[pl.ds(off, tk), :]
    else:
        b = b_ref[...]
    acc_ref[...] += jnp.dot(a, b, preferred_element_type=jnp.float32)

    @pl.when(k == pl.num_programs(2) - 1)
    def _():
        dis = dis_ref[...]                                  # (tm, 1) f32
        out = acc_ref[...] * dis                            # row scaling d^{-1/2}
        # Mask bias to real rows (padded rows have dis == 0) so padding stays 0.
        out = out + bias_ref[...] * (dis > 0.0).astype(jnp.float32)
        if apply_relu:
            out = jnp.maximum(out, 0.0)
        o_ref[...] = out.astype(o_ref.dtype)


def _pick_tile(dim, cap):
    """Largest multiple of 128 that divides `dim` and is <= cap (dim % 128 == 0)."""
    t = min(cap, dim)
    t = (t // 128) * 128
    while dim % t != 0:
        t -= 128
    return t


def _tpu_budget():
    """Generation-aware tile caps / VMEM budget.

    v7x-class parts (64 MiB VMEM, ~3.2 TB/s HBM) want bigger K tiles to amortize
    per-step overhead but a tighter VMEM limit; 128 MiB parts (v5e/v6e) get more
    VMEM headroom for the resident XW slab."""
    vmem_bytes = 128 * 1024 * 1024
    try:
        vmem_bytes = int(pltpu.get_tpu_info().vmem_capacity_bytes)
    except Exception:
        pass
    if vmem_bytes <= 64 * 1024 * 1024:
        return dict(tm_cap=512, tk_cap=2048, vmem_limit=56 * 1024 * 1024)
    return dict(tm_cap=512, tk_cap=1024, vmem_limit=96 * 1024 * 1024)


def fused_matmul(a, b, dis, bias, *, apply_relu, b_resident, out_dtype,
                 tm_cap=512, tk_cap=1024, vmem_limit=64 * 1024 * 1024):
    """relu?(diag(dis) @ (a @ b) + bias), all dims multiples of 128.

    a: (M, K)  bf16 or int8 counts
    b: (K, N)  bf16
    dis:  (M, 1) f32 row scaling (0 for padded rows)
    bias: (1, N) f32
    """
    m, k_dim = a.shape
    k2, n = b.shape
    assert k_dim == k2 and bias.shape == (1, n) and dis.shape == (m, 1)

    tm = _pick_tile(m, tm_cap)
    tn = _pick_tile(n, 256)
    tk = _pick_tile(k_dim, tk_cap)
    cast_a = (a.dtype == jnp.int8)

    if b_resident:
        # Double-buffered resident slab must leave room for A tiles + acc + out.
        resident_bytes = 2 * k_dim * tn * b.dtype.itemsize
        if resident_bytes > vmem_limit // 3:
            b_resident = False
    if b_resident:
        b_spec = pl.BlockSpec((k_dim, tn), lambda i, j, k: (0, j))
    else:
        b_spec = pl.BlockSpec((tk, tn), lambda i, j, k: (k, j))

    kernel = functools.partial(_fused_matmul_kernel, tk=tk, b_resident=b_resident,
                               cast_a=cast_a, apply_relu=apply_relu)
    return pl.pallas_call(
        kernel,
        out_shape=jax.ShapeDtypeStruct((m, n), out_dtype),
        grid_spec=pltpu.PrefetchScalarGridSpec(
            num_scalar_prefetch=0,
            grid=(m // tm, n // tn, k_dim // tk),
            in_specs=[
                pl.BlockSpec((tm, tk), lambda i, j, k: (i, k)),
                b_spec,
                pl.BlockSpec((tm, 1), lambda i, j, k: (i, 0)),
                pl.BlockSpec((1, tn), lambda i, j, k: (0, j)),
            ],
            out_specs=pl.BlockSpec((tm, tn), lambda i, j, k: (i, j)),
            scratch_shapes=[pltpu.VMEM((tm, tn), jnp.float32)],
        ),
        compiler_params=pltpu.CompilerParams(
            dimension_semantics=("parallel", "parallel", "arbitrary"),
            vmem_limit_bytes=vmem_limit,
        ),
    )(a, b, dis, bias)


# ---------------------------------------------------------------------------
# Graph setup (plain JAX glue), PyG gcn_norm semantics, factored form
# ---------------------------------------------------------------------------
def build_graph(edge_index, num_nodes, n_pad):
    """Return (counts, dis) with counts int8 (n_pad, n_pad) and dis f32 (n_pad, 1).

    counts[dst, src] = multiplicity of edge src->dst (self-loops dropped) plus
    a unit self-loop on the diagonal for real nodes; dis = deg^{-1/2} with
    deg = in-degree row sum of counts (computed with an O(E) scatter)."""
    src, dst = edge_index[0], edge_index[1]
    not_self = src != dst

    counts = jnp.zeros((n_pad, n_pad), jnp.int8)
    counts = counts.at[dst, src].add(not_self.astype(jnp.int8))
    diag = jnp.arange(num_nodes)
    counts = counts.at[diag, diag].set(1)

    deg = jnp.zeros((num_nodes,), jnp.float32)
    deg = deg.at[dst].add(not_self.astype(jnp.float32)) + 1.0   # +1 self-loop
    dis = jax.lax.rsqrt(deg)
    dis = jnp.pad(dis, (0, n_pad - num_nodes)).reshape(n_pad, 1)
    return counts, dis


# ---------------------------------------------------------------------------
# Padding helpers (lane-dense layouts: everything padded to multiples of 128)
# ---------------------------------------------------------------------------
def _round_up(x, m):
    return ((x + m - 1) // m) * m


def _pad2(x, rows, cols):
    pr, pc = rows - x.shape[0], cols - x.shape[1]
    if pr or pc:
        x = jnp.pad(x, ((0, pr), (0, pc)))
    return x


# ---------------------------------------------------------------------------
# GCN forward
# ---------------------------------------------------------------------------
def init_gcn_params(key, in_dim, hid_dim, out_dim, n_layers):
    dims = [in_dim]
    if n_layers > 1:
        dims += [hid_dim] * (n_layers - 1)
    dims += [out_dim]
    params = []
    for layer in range(n_layers):
        d_in, d_out = dims[layer], dims[layer + 1]
        key, sub = jax.random.split(key)
        scale = jnp.sqrt(2.0 / (d_in + d_out)).astype(jnp.float32)
        w = jax.random.normal(sub, (d_in, d_out), jnp.float32) * scale
        b = jnp.zeros((1, d_out), jnp.float32)
        params.append((w, b))
    return params


def gcn_forward(x, edge_index, params):
    n, in_dim = x.shape
    n_pad = _round_up(n, 128)
    n_layers = len(params)
    budget = _tpu_budget()

    counts, dis = build_graph(edge_index, n, n_pad)

    h = _pad2(x, n_pad, _round_up(in_dim, 128)).astype(jnp.bfloat16)

    for i, (w, b) in enumerate(params):
        d_in, d_out = w.shape
        d_in_pad = _round_up(d_in, 128)
        d_out_pad = _round_up(d_out, 128)
        w_pad = _pad2(w, d_in_pad, d_out_pad).astype(jnp.bfloat16)
        b_pad = _pad2(b, 1, d_out_pad).astype(jnp.float32)
        zero_bias = jnp.zeros((1, d_out_pad), jnp.float32)
        last = i == n_layers - 1

        # Feature transform with the propagation column-scaling folded into its
        # epilogue:  XW_scaled = diag(d^-1/2) @ (H @ W).
        xw = fused_matmul(h, w_pad, dis, zero_bias, apply_relu=False,
                          b_resident=False, out_dtype=jnp.bfloat16, **budget)
        # Propagation with int8 counts, resident XW, fused row scaling + bias
        # (+ ReLU on hidden layers):  H' = relu?(diag(d^-1/2) @ (C @ XW_scaled) + b)
        h = fused_matmul(counts, xw, dis, b_pad, apply_relu=not last,
                         b_resident=True,
                         out_dtype=jnp.float32 if last else jnp.bfloat16, **budget)

    out_dim = params[-1][0].shape[1]
    return h[:n, :out_dim]


if __name__ == "__main__":
    # Small deterministic example consistent with GCN(in_dim, hid_dim, out_dim, n_layers)
    N = 256          # number of graph nodes
    E = 1024         # number of (directed) random edges
    IN_DIM, HID_DIM, OUT_DIM, N_LAYERS = 16, 32, 8, 2

    key = jax.random.PRNGKey(0)
    k_x, k_e, k_p = jax.random.split(key, 3)

    x = jax.random.normal(k_x, (N, IN_DIM), jnp.float32)
    edge_index = jax.random.randint(k_e, (2, E), 0, N, dtype=jnp.int32)

    params = init_gcn_params(k_p, IN_DIM, HID_DIM, OUT_DIM, N_LAYERS)

    out = gcn_forward(x, edge_index, params)
    out = jax.block_until_ready(out)
    assert out.shape == (N, OUT_DIM), out.shape
    assert bool(jnp.all(jnp.isfinite(out)))
    print("KERNEL_OK")
</pallas_src>

<mosaic_0001>
module attributes {stable_mosaic.version = 11 : i64} {
  func.func @_fused_matmul_kernel(%arg0: i32, %arg1: i32, %arg2: i32, %arg3: memref<256x128xbf16, #tpu.memory_space<vmem>>, %arg4: memref<128x128xbf16, #tpu.memory_space<vmem>>, %arg5: memref<256x1xf32, #tpu.memory_space<vmem>>, %arg6: memref<1x128xf32, #tpu.memory_space<vmem>>, %arg7: memref<256x128xbf16, #tpu.memory_space<vmem>>, %arg8: memref<256x128xf32, #tpu.memory_space<vmem>>) attributes {dimension_semantics = [#tpu.dimension_semantics<parallel>, #tpu.dimension_semantics<parallel>, #tpu.dimension_semantics<arbitrary>], iteration_bounds = array<i64: 1, 1, 1>, scalar_prefetch = 0 : i64, scratch_operands = 1 : i64, tpu.core_type = #tpu.core_type<tc>, window_params = [{transform_indices = @transform_0, window_bounds = array<i64: 256, 128>}, {transform_indices = @transform_1, window_bounds = array<i64: 128, 128>}, {transform_indices = @transform_2, window_bounds = array<i64: 256, 1>}, {transform_indices = @transform_3, window_bounds = array<i64: 1, 128>}, {transform_indices = @transform_4, window_bounds = array<i64: 256, 128>}]} {
    %c0_i32 = arith.constant 0 : i32
    %0 = arith.cmpi eq, %arg2, %c0_i32 : i32
    %1 = arith.extui %0 : i1 to i32
    %c0_i32_0 = arith.constant 0 : i32
    %2 = arith.cmpi ne, %1, %c0_i32_0 : i32
    scf.if %2 {
      %cst_10 = arith.constant 0.000000e+00 : f32
      %12 = vector.broadcast %cst_10 : f32 to vector<256x128xf32>
      %c0_11 = arith.constant 0 : index
      %c0_12 = arith.constant 0 : index
      %13 = vector.load %arg8[%c0_11, %c0_12] : memref<256x128xf32, #tpu.memory_space<vmem>>, vector<256x128xf32>
      tpu.vector_store %arg8[%c0_11, %c0_12], %12 {strides = array<i32>} : memref<256x128xf32, #tpu.memory_space<vmem>>, vector<256x128xf32>,
    } else {
    }
    %c0 = arith.constant 0 : index
    %c0_1 = arith.constant 0 : index
    %3 = vector.load %arg3[%c0, %c0_1] : memref<256x128xbf16, #tpu.memory_space<vmem>>, vector<256x128xbf16>
    %c0_2 = arith.constant 0 : index
    %c0_3 = arith.constant 0 : index
    %4 = vector.load %arg4[%c0_2, %c0_3] : memref<128x128xbf16, #tpu.memory_space<vmem>>, vector<128x128xbf16>
    %c0_4 = arith.constant 0 : index
    %c0_5 = arith.constant 0 : index
    %5 = vector.load %arg8[%c0_4, %c0_5] : memref<256x128xf32, #tpu.memory_space<vmem>>, vector<256x128xf32>
    %cst = arith.constant dense<0.000000e+00> : vector<256x128xf32>
    %6 = tpu.matmul %3, %4, %cst {dimension_numbers = #tpu.dot_dimension_numbers<[1], [0], [0], [1], [0, 0, 1, 1], [], []>} : vector<256x128xbf16>, vector<128x128xbf16>, vector<256x128xf32> -> vector<256x128xf32>
    %7 = arith.addf %5, %6 : vector<256x128xf32>
    %c0_6 = arith.constant 0 : index
    %c0_7 = arith.constant 0 : index
    %8 = vector.load %arg8[%c0_6, %c0_7] : memref<256x128xf32, #tpu.memory_space<vmem>>, vector<256x128xf32>
    tpu.vector_store %arg8[%c0_6, %c0_7], %7 {strides = array<i32>} : memref<256x128xf32, #tpu.memory_space<vmem>>, vector<256x128xf32>,
    %c0_i32_8 = arith.constant 0 : i32
    %9 = arith.cmpi eq, %arg2, %c0_i32_8 : i32
    %10 = arith.extui %9 : i1 to i32
    %c0_i32_9 = arith.constant 0 : i32
    %11 = arith.cmpi ne, %10, %c0_i32_9 : i32
    scf.if %11 {
      %c0_10 = arith.constant 0 : index
      %c0_11 = arith.constant 0 : index
      %12 = vector.load %arg5[%c0_10, %c0_11] : memref<256x1xf32, #tpu.memory_space<vmem>>, vector<256x1xf32>
      %c0_12 = arith.constant 0 : index
      %c0_13 = arith.constant 0 : index
      %13 = vector.load %arg8[%c0_12, %c0_13] : memref<256x128xf32, #tpu.memory_space<vmem>>, vector<256x128xf32>
      %14 = vector.broadcast %12 : vector<256x1xf32> to vector<256x128xf32>
      %15 = arith.mulf %13, %14 : vector<256x128xf32>
      %c0_14 = arith.constant 0 : index
      %c0_15 = arith.constant 0 : index
      %16 = vector.load %arg6[%c0_14, %c0_15] : memref<1x128xf32, #tpu.memory_space<vmem>>, vector<1x128xf32>
      %cst_16 = arith.constant 0.000000e+00 : f32
      %17 = vector.broadcast %cst_16 : f32 to vector<256x1xf32>
      %18 = arith.cmpf ogt, %12, %17 : vector<256x1xf32>
      %19 = arith.extui %18 : vector<256x1xi1> to vector<256x1xi32>
      %20 = arith.sitofp %19 : vector<256x1xi32> to vector<256x1xf32>
      %21 = vector.broadcast %16 : vector<1x128xf32> to vector<256x128xf32>
      %22 = vector.broadcast %20 : vector<256x1xf32> to vector<256x128xf32>
      %23 = arith.mulf %21, %22 : vector<256x128xf32>
      %24 = arith.addf %15, %23 : vector<256x128xf32>
      %25 = arith.truncf %24 : vector<256x128xf32> to vector<256x128xbf16>
      %c0_17 = arith.constant 0 : index
      %c0_18 = arith.constant 0 : index
      %26 = vector.load %arg7[%c0_17, %c0_18] : memref<256x128xbf16, #tpu.memory_space<vmem>>, vector<256x128xbf16>
      tpu.vector_store %arg7[%c0_17, %c0_18], %25 {strides = array<i32>} : memref<256x128xbf16, #tpu.memory_space<vmem>>, vector<256x128xbf16>,
    } else {
    }
    return
  }
  func.func @transform_0(%arg0: i32, %arg1: i32, %arg2: i32) -> (i32, i32) {
    %c0_i32 = arith.constant 0 : i32
    return %arg0, %arg2 : i32, i32
  }
  func.func @transform_1(%arg0: i32, %arg1: i32, %arg2: i32) -> (i32, i32) {
    %c0_i32 = arith.constant 0 : i32
    return %arg2, %arg1 : i32, i32
  }
  func.func @transform_2(%arg0: i32, %arg1: i32, %arg2: i32) -> (i32, i32) {
    %c0_i32 = arith.constant 0 : i32
    %c0_i32_0 = arith.constant 0 : i32
    return %arg0, %c0_i32 : i32, i32
  }
  func.func @transform_3(%arg0: i32, %arg1: i32, %arg2: i32) -> (i32, i32) {
    %c0_i32 = arith.constant 0 : i32
    %c0_i32_0 = arith.constant 0 : i32
    return %c0_i32, %arg1 : i32, i32
  }
  func.func @transform_4(%arg0: i32, %arg1: i32, %arg2: i32) -> (i32, i32) {
    %c0_i32 = arith.constant 0 : i32
    return %arg0, %arg1 : i32, i32
  }
}

</mosaic_0001>

<llo_original>
// kernel: tpu_custom_call.1
$region0: #{tpu_custom_call.1}
  #allocation0 [shape = 'u32[]', space=smem, size = 0x4, offset = 0x4, fixed_abs, tag = 'smem constant byte address 0x4 - core index']
  #allocation1 [shape = 'u32[144,128]{1,0:T(1,128)}', space=vmem, size = 0x12000, scoped, tag = 'internal scratch']
  #allocation2 [shape = 'f32[256,128]{1,0:T(8,128)}', space=vmem, size = 0x20000, scoped, tag = 'scratch operand']
  %s0 = inlined_call_operand.hbm [shape: bf16[256,128], index: 0, kind: input, shape index: {}]
  %s1 = inlined_call_operand.hbm [shape: bf16[128,128], index: 1, kind: input, shape index: {}]
  %s2 = inlined_call_operand.hbm [shape: f32[256,1], index: 2, kind: input, shape index: {}]
  %s3 = inlined_call_operand.hbm [shape: f32[1,128], index: 3, kind: input, shape index: {}]
  %s4 = inlined_call_operand.hbm [shape: bf16[256,128], index: 4, kind: output, shape index: {}]
  %s5 = sld [smem:[#allocation0]]
  $region50: #{tpu_custom_call.1} parent=0
    _
  %s7 = ssub.s32 1, %s5
  %s8 = scalar_select 0, %s7, %s5
  $region1: #{tpu_custom_call.1} parent=0
    #allocation3 [shape = 'u8[65536]{0}', space=vmem, size = 0x10000, scoped, tag = 'input window, operand 0, single buffered']
    #allocation4 [shape = 's32[1]{0}', space=sflag, size = 0x4, scoped, tag = 'scoped memory for tpu_custom_call.1']
    #allocation5 [shape = 's32[1]{0}', space=sflag, size = 0x4, scoped, tag = 'scoped memory for tpu_custom_call.1']
    #allocation6 [shape = 'u8[32768]{0}', space=vmem, size = 0x8000, scoped, tag = 'input window, operand 1, single buffered']
    #allocation7 [shape = 's32[1]{0}', space=sflag, size = 0x4, scoped, tag = 'scoped memory for tpu_custom_call.1']
    #allocation8 [shape = 'u8[131072]{0}', space=vmem, size = 0x20000, scoped, tag = 'input window, operand 2, single buffered']
    #allocation9 [shape = 'u8[512]{0}', space=vmem, size = 0x400, scoped, tag = 'input window, operand 3, single buffered']
    #allocation10 [shape = 's32[1]{0}', space=sflag, size = 0x4, scoped, tag = 'scoped memory for tpu_custom_call.1']
    #allocation11 [shape = 'u8[65536]{0}', space=vmem, size = 0x10000, scoped, tag = 'output window, operand 0, single buffered']
    %9 = vsyncpa [#allocation4], 0
    %10 = vsyncpa [#allocation7], 0
    %11 = vsyncpa [#allocation10], 0
    %12 = vsyncpa [#allocation5], 0
    // Predicated region
    $region2: #{tpu_custom_call.1} parent=1 // pred_check
      _
    $region3: #{tpu_custom_call.1} parent=1 // pred_check_branch
      %14 = sbr.rel (0) target = $region5
    $region4: #{tpu_custom_call.1} parent=1 // pred_region
      %s16 = ssub.s32 2048, 2048
      %17 = vsyncadd [#allocation4], %s16
      %s18 = sshll.u32 [#allocation3], 4
      %s19 = int_to_ptr.vmem [resolvable:$true] %s18
      %24 = dma.hbm_to_vmem [thread:$0]  %s0, 2048, %s19, [#allocation4], 64, 64, 4
    $region5: #{tpu_custom_call.1} parent=1 // pred_fallthru
      _
    // Predicated region
    $region6: #{tpu_custom_call.1} parent=1 // pred_check
      _
    $region7: #{tpu_custom_call.1} parent=1 // pred_check_branch
      %26 = sbr.rel (0) target = $region9
    $region8: #{tpu_custom_call.1} parent=1 // pred_region
      %s28 = ssub.s32 1024, 1024
      %29 = vsyncadd [#allocation7], %s28
      %s30 = sshll.u32 [#allocation6], 4
      %s31 = int_to_ptr.vmem [resolvable:$true] %s30
      %36 = dma.hbm_to_vmem [thread:$0]  %s1, 1024, %s31, [#allocation7], 64, 64, 4
    $region9: #{tpu_custom_call.1} parent=1 // pred_fallthru
      _
    // Predicated region
    $region10: #{tpu_custom_call.1} parent=1 // pred_check
      _
    $region11: #{tpu_custom_call.1} parent=1 // pred_check_branch
      %38 = sbr.rel (0) target = $region13
    $region12: #{tpu_custom_call.1} parent=1 // pred_region
      %s40 = ssub.s32 4096, 4096
      %41 = vsyncadd [#allocation7], %s40
      %s42 = sshll.u32 [#allocation8], 4
      %s43 = int_to_ptr.vmem [resolvable:$true] %s42
      %48 = dma.hbm_to_vmem [thread:$0]  %s2, 4096, %s43, [#allocation7], 128, 128, 8
    $region13: #{tpu_custom_call.1} parent=1 // pred_fallthru
      _
    // Predicated region
    $region14: #{tpu_custom_call.1} parent=1 // pred_check
      _
    $region15: #{tpu_custom_call.1} parent=1 // pred_check_branch
      %50 = sbr.rel (0) target = $region17
    $region16: #{tpu_custom_call.1} parent=1 // pred_region
      %s52 = ssub.s32 16, 16
      %53 = vsyncadd [#allocation10], %s52
      %s55 = sshll.u32 [#allocation9], 4
      %s56 = int_to_ptr.vmem [resolvable:$true] %s55
      %58 = dma.hbm_to_vmem [thread:$0]  %s3, 16, %s56, [#allocation10]
    $region17: #{tpu_custom_call.1} parent=1 // pred_fallthru
      _
    // Predicated region
    $region18: #{tpu_custom_call.1} parent=1 // pred_check
      _
    $region19: #{tpu_custom_call.1} parent=1 // pred_check_branch
      %60 = sbr.rel (0) target = $region21
    $region20: #{tpu_custom_call.1} parent=1 // pred_region
      %61 = dma.done [#allocation4], 2048
    $region21: #{tpu_custom_call.1} parent=1 // pred_fallthru
      _
    // Predicated region
    $region22: #{tpu_custom_call.1} parent=1 // pred_check
      _
    $region23: #{tpu_custom_call.1} parent=1 // pred_check_branch
      %63 = sbr.rel (0) target = $region25
    $region24: #{tpu_custom_call.1} parent=1 // pred_region
      %64 = dma.done [#allocation7], 1024
    $region25: #{tpu_custom_call.1} parent=1 // pred_fallthru
      _
    // Predicated region
    $region26: #{tpu_custom_call.1} parent=1 // pred_check
      _
    $region27: #{tpu_custom_call.1} parent=1 // pred_check_branch
      %66 = sbr.rel (0) target = $region29
    $region28: #{tpu_custom_call.1} parent=1 // pred_region
      %67 = dma.done [#allocation7], 4096
    $region29: #{tpu_custom_call.1} parent=1 // pred_fallthru
      _
    // Predicated region
    $region30: #{tpu_custom_call.1} parent=1 // pred_check
      _
    $region31: #{tpu_custom_call.1} parent=1 // pred_check_branch
      %69 = sbr.rel (0) target = $region33
    $region32: #{tpu_custom_call.1} parent=1 // pred_region
      %70 = dma.done [#allocation10], 16
    $region33: #{tpu_custom_call.1} parent=1 // pred_fallthru
      _
    %p72 = scmp.eq.s32.totalorder 0, 0
    // Predicated region
    $region34: #{tpu_custom_call.1} parent=1 // pred_check
      %p73 = pneg %p72
    $region35: #{tpu_custom_call.1} parent=1 // pred_check_branch
      %75 = sbr.rel (%p73) target = $region37
    $region36: #{tpu_custom_call.1} parent=1 // pred_region
      %76 = vst [vmem:[#allocation2] sm:$0xff] 0.0
      %77 = vst [vmem:[#allocation2 + $0x8] sm:$0xff] 0.0
      %78 = vst [vmem:[#allocation2 + $0x10] sm:$0xff] 0.0
      %79 = vst [vmem:[#allocation2 + $0x18] sm:$0xff] 0.0
      %80 = vst [vmem:[#allocation2 + $0x20] sm:$0xff] 0.0
      %81 = vst [vmem:[#allocation2 + $0x28] sm:$0xff] 0.0
      %82 = vst [vmem:[#allocation2 + $0x30] sm:$0xff] 0.0
      %83 = vst [vmem:[#allocation2 + $0x38] sm:$0xff] 0.0
      %84 = vst [vmem:[#allocation2 + $0x40] sm:$0xff] 0.0
      %85 = vst [vmem:[#allocation2 + $0x48] sm:$0xff] 0.0
      %86 = vst [vmem:[#allocation2 + $0x50] sm:$0xff] 0.0
      %87 = vst [vmem:[#allocation2 + $0x58] sm:$0xff] 0.0
      %88 = vst [vmem:[#allocation2 + $0x60] sm:$0xff] 0.0
      %89 = vst [vmem:[#allocation2 + $0x68] sm:$0xff] 0.0
      %90 = vst [vmem:[#allocation2 + $0x70] sm:$0xff] 0.0
      %91 = vst [vmem:[#allocation2 + $0x78] sm:$0xff] 0.0
      %92 = vst [vmem:[#allocation2 + $0x80] sm:$0xff] 0.0
      %93 = vst [vmem:[#allocation2 + $0x88] sm:$0xff] 0.0
      %94 = vst [vmem:[#allocation2 + $0x90] sm:$0xff] 0.0
      %95 = vst [vmem:[#allocation2 + $0x98] sm:$0xff] 0.0
      %96 = vst [vmem:[#allocation2 + $0xa0] sm:$0xff] 0.0
      %97 = vst [vmem:[#allocation2 + $0xa8] sm:$0xff] 0.0
      %98 = vst [vmem:[#allocation2 + $0xb0] sm:$0xff] 0.0
      %99 = vst [vmem:[#allocation2 + $0xb8] sm:$0xff] 0.0
      %100 = vst [vmem:[#allocation2 + $0xc0] sm:$0xff] 0.0
      %101 = vst [vmem:[#allocation2 + $0xc8] sm:$0xff] 0.0
      %102 = vst [vmem:[#allocation2 + $0xd0] sm:$0xff] 0.0
      %103 = vst [vmem:[#allocation2 + $0xd8] sm:$0xff] 0.0
      %104 = vst [vmem:[#allocation2 + $0xe0] sm:$0xff] 0.0
      %105 = vst [vmem:[#allocation2 + $0xe8] sm:$0xff] 0.0
      %106 = vst [vmem:[#allocation2 + $0xf0] sm:$0xff] 0.0
      %107 = vst [vmem:[#allocation2 + $0xf8] sm:$0xff] 0.0
    $region37: #{tpu_custom_call.1} parent=1 // pred_fallthru
      _
    %v108 = vld [vmem:[#allocation3] sm:$0xf]
    %v109 = vld [vmem:[#allocation3 + $0x4] sm:$0xf]
    %v110 = vld [vmem:[#allocation3 + $0x8] sm:$0xf]
    %v111 = vld [vmem:[#allocation3 + $0xc] sm:$0xf]
    %v112 = vld [vmem:[#allocation3 + $0x10] sm:$0xf]
    %v113 = vld [vmem:[#allocation3 + $0x14] sm:$0xf]
    %v114 = vld [vmem:[#allocation3 + $0x18] sm:$0xf]
    %v115 = vld [vmem:[#allocation3 + $0x1c] sm:$0xf]
    %v116 = vld [vmem:[#allocation3 + $0x20] sm:$0xf]
    %v117 = vld [vmem:[#allocation3 + $0x24] sm:$0xf]
    %v118 = vld [vmem:[#allocation3 + $0x28] sm:$0xf]
    %v119 = vld [vmem:[#allocation3 + $0x2c] sm:$0xf]
    %v120 = vld [vmem:[#allocation3 + $0x30] sm:$0xf]
    %v121 = vld [vmem:[#allocation3 + $0x34] sm:$0xf]
    %v122 = vld [vmem:[#allocation3 + $0x38] sm:$0xf]
    %v123 = vld [vmem:[#allocation3 + $0x3c] sm:$0xf]
    %v124 = vld [vmem:[#allocation3 + $0x40] sm:$0xf]
    %v125 = vld [vmem:[#allocation3 + $0x44] sm:$0xf]
    %v126 = vld [vmem:[#allocation3 + $0x48] sm:$0xf]
    %v127 = vld [vmem:[#allocation3 + $0x4c] sm:$0xf]
    %v128 = vld [vmem:[#allocation3 + $0x50] sm:$0xf]
    %v129 = vld [vmem:[#allocation3 + $0x54] sm:$0xf]
    %v130 = vld [vmem:[#allocation3 + $0x58] sm:$0xf]
    %v131 = vld [vmem:[#allocation3 + $0x5c] sm:$0xf]
    %v132 = vld [vmem:[#allocation3 + $0x60] sm:$0xf]
    %v133 = vld [vmem:[#allocation3 + $0x64] sm:$0xf]
    %v134 = vld [vmem:[#allocation3 + $0x68] sm:$0xf]
    %v135 = vld [vmem:[#allocation3 + $0x6c] sm:$0xf]
    %v136 = vld [vmem:[#allocation3 + $0x70] sm:$0xf]
    %v137 = vld [vmem:[#allocation3 + $0x74] sm:$0xf]
    %v138 = vld [vmem:[#allocation3 + $0x78] sm:$0xf]
    %v139 = vld [vmem:[#allocation3 + $0x7c] sm:$0xf]
    %v140 = vld [vmem:[#allocation6] sm:$0xf]
    %v141 = vld [vmem:[#allocation6 + $0x4] sm:$0xf]
    %v142 = vld [vmem:[#allocation6 + $0x8] sm:$0xf]
    %v143 = vld [vmem:[#allocation6 + $0xc] sm:$0xf]
    %v144 = vld [vmem:[#allocation6 + $0x10] sm:$0xf]
    %v145 = vld [vmem:[#allocation6 + $0x14] sm:$0xf]
    %v146 = vld [vmem:[#allocation6 + $0x18] sm:$0xf]
    %v147 = vld [vmem:[#allocation6 + $0x1c] sm:$0xf]
    %v148 = vld [vmem:[#allocation6 + $0x20] sm:$0xf]
    %v149 = vld [vmem:[#allocation6 + $0x24] sm:$0xf]
    %v150 = vld [vmem:[#allocation6 + $0x28] sm:$0xf]
    %v151 = vld [vmem:[#allocation6 + $0x2c] sm:$0xf]
    %v152 = vld [vmem:[#allocation6 + $0x30] sm:$0xf]
    %v153 = vld [vmem:[#allocation6 + $0x34] sm:$0xf]
    %v154 = vld [vmem:[#allocation6 + $0x38] sm:$0xf]
    %v155 = vld [vmem:[#allocation6 + $0x3c] sm:$0xf]
    %v156 = vld [vmem:[#allocation2] sm:$0xff]
    %v157 = vld [vmem:[#allocation2 + $0x8] sm:$0xff]
    %v158 = vld [vmem:[#allocation2 + $0x10] sm:$0xff]
    %v159 = vld [vmem:[#allocation2 + $0x18] sm:$0xff]
    %v160 = vld [vmem:[#allocation2 + $0x20] sm:$0xff]
    %v161 = vld [vmem:[#allocation2 + $0x28] sm:$0xff]
    %v162 = vld [vmem:[#allocation2 + $0x30] sm:$0xff]
    %v163 = vld [vmem:[#allocation2 + $0x38] sm:$0xff]
    %v164 = vld [vmem:[#allocation2 + $0x40] sm:$0xff]
    %v165 = vld [vmem:[#allocation2 + $0x48] sm:$0xff]
    %v166 = vld [vmem:[#allocation2 + $0x50] sm:$0xff]
    %v167 = vld [vmem:[#allocation2 + $0x58] sm:$0xff]
    %v168 = vld [vmem:[#allocation2 + $0x60] sm:$0xff]
    %v169 = vld [vmem:[#allocation2 + $0x68] sm:$0xff]
    %v170 = vld [vmem:[#allocation2 + $0x70] sm:$0xff]
    %v171 = vld [vmem:[#allocation2 + $0x78] sm:$0xff]
    %v172 = vld [vmem:[#allocation2 + $0x80] sm:$0xff]
    %v173 = vld [vmem:[#allocation2 + $0x88] sm:$0xff]
    %v174 = vld [vmem:[#allocation2 + $0x90] sm:$0xff]
    %v175 = vld [vmem:[#allocation2 + $0x98] sm:$0xff]
    %v176 = vld [vmem:[#allocation2 + $0xa0] sm:$0xff]
    %v177 = vld [vmem:[#allocation2 + $0xa8] sm:$0xff]
    %v178 = vld [vmem:[#allocation2 + $0xb0] sm:$0xff]
    %v179 = vld [vmem:[#allocation2 + $0xb8] sm:$0xff]
    %v180 = vld [vmem:[#allocation2 + $0xc0] sm:$0xff]
    %v181 = vld [vmem:[#allocation2 + $0xc8] sm:$0xff]
    %v182 = vld [vmem:[#allocation2 + $0xd0] sm:$0xff]
    %v183 = vld [vmem:[#allocation2 + $0xd8] sm:$0xff]
    %v184 = vld [vmem:[#allocation2 + $0xe0] sm:$0xff]
    %v185 = vld [vmem:[#allocation2 + $0xe8] sm:$0xff]
    %v186 = vld [vmem:[#allocation2 + $0xf0] sm:$0xff]
    %v187 = vld [vmem:[#allocation2 + $0xf8] sm:$0xff]
    %v220 = vunpack.c.l.b16 %v108
    %v221 = vunpack.c.l.b16 %v109
    %v222 = vunpack.c.l.b16 %v110
    %v223 = vunpack.c.l.b16 %v111
    %v224 = vunpack.c.l.b16 %v112
    %v225 = vunpack.c.l.b16 %v113
    %v226 = vunpack.c.l.b16 %v114
    %v227 = vunpack.c.l.b16 %v115
    %v228 = vunpack.c.l.b16 %v116
    %v229 = vunpack.c.l.b16 %v117
    %v230 = vunpack.c.l.b16 %v118
    %v231 = vunpack.c.l.b16 %v119
    %v232 = vunpack.c.l.b16 %v120
    %v233 = vunpack.c.l.b16 %v121
    %v234 = vunpack.c.l.b16 %v122
    %v235 = vunpack.c.l.b16 %v123
    %v236 = vunpack.c.l.b16 %v124
    %v237 = vunpack.c.l.b16 %v125
    %v238 = vunpack.c.l.b16 %v126
    %v239 = vunpack.c.l.b16 %v127
    %v240 = vunpack.c.l.b16 %v128
    %v241 = vunpack.c.l.b16 %v129
    %v242 = vunpack.c.l.b16 %v130
    %v243 = vunpack.c.l.b16 %v131
    %v244 = vunpack.c.l.b16 %v132
    %v245 = vunpack.c.l.b16 %v133
    %v246 = vunpack.c.l.b16 %v134
    %v247 = vunpack.c.l.b16 %v135
    %v248 = vunpack.c.l.b16 %v136
    %v249 = vunpack.c.l.b16 %v137
    %v250 = vunpack.c.l.b16 %v138
    %v251 = vunpack.c.l.b16 %v139
    %v252 = vpack.c.b16 %v221, %v220
    %v253 = vpack.c.b16 %v223, %v222
    %v254 = vpack.c.b16 %v225, %v224
    %v255 = vpack.c.b16 %v227, %v226
    %v256 = vpack.c.b16 %v229, %v228
    %v257 = vpack.c.b16 %v231, %v230
    %v258 = vpack.c.b16 %v233, %v232
    %v259 = vpack.c.b16 %v235, %v234
    %v260 = vpack.c.b16 %v237, %v236
    %v261 = vpack.c.b16 %v239, %v238
    %v262 = vpack.c.b16 %v241, %v240
    %v263 = vpack.c.b16 %v243, %v242
    %v264 = vpack.c.b16 %v245, %v244
    %v265 = vpack.c.b16 %v247, %v246
    %v266 = vpack.c.b16 %v249, %v248
    %v267 = vpack.c.b16 %v251, %v250
    %v300 = vunpack.c.l.b16 %v140
    %v301 = vunpack.c.l.b16 %v141
    %v302 = vunpack.c.l.b16 %v142
    %v303 = vunpack.c.l.b16 %v143
    %v304 = vunpack.c.l.b16 %v144
    %v305 = vunpack.c.l.b16 %v145
    %v306 = vunpack.c.l.b16 %v146
    %v307 = vunpack.c.l.b16 %v147
    %v308 = vunpack.c.l.b16 %v148
    %v309 = vunpack.c.l.b16 %v149
    %v310 = vunpack.c.l.b16 %v150
    %v311 = vunpack.c.l.b16 %v151
    %v312 = vunpack.c.l.b16 %v152
    %v313 = vunpack.c.l.b16 %v153
    %v314 = vunpack.c.l.b16 %v154
    %v315 = vunpack.c.l.b16 %v155
    %v316 = vpack.c.b16 %v301, %v300
    %v317 = vpack.c.b16 %v303, %v302
    %v318 = vpack.c.b16 %v305, %v304
    %v319 = vpack.c.b16 %v307, %v306
    %v320 = vpack.c.b16 %v309, %v308
    %v321 = vpack.c.b16 %v311, %v310
    %v322 = vpack.c.b16 %v313, %v312
    %v323 = vpack.c.b16 %v315, %v314
    %332 = vmatprep.subr.bf16.mxu0 0
    %333 = vmatpush1.bf16.msra.mxu0 %v316
    %334 = vmatprep.subr.bf16.mxu0 0
    %335 = vmatpush1.bf16.msra.mxu0 %v317
    %336 = vmatprep.subr.bf16.mxu0 0
    %337 = vmatpush1.bf16.msra.mxu0 %v318
    %338 = vmatprep.subr.bf16.mxu0 0
    %339 = vmatpush1.bf16.msra.mxu0 %v319
    %340 = vmatprep.subr.bf16.mxu0 0
    %341 = vmatpush1.bf16.msra.mxu0 %v320
    %342 = vmatprep.subr.bf16.mxu0 0
    %343 = vmatpush1.bf16.msra.mxu0 %v321
    %344 = vmatprep.subr.bf16.mxu0 0
    %345 = vmatpush1.bf16.msra.mxu0 %v322
    %346 = vmatprep.subr.bf16.mxu0 0
    %347 = vmatpush1.bf16.msra.mxu0 %v323
    %348 = vmatprep.subr.bf16.mxu0 0
    %349 = vmatpush1.bf16.msra.mxu0 0
    %350 = vmatprep.subr.bf16.mxu0 0
    %351 = vmatpush1.bf16.msra.mxu0 0
    %352 = vmatprep.subr.bf16.mxu0 0
    %353 = vmatpush1.bf16.msra.mxu0 0
    %354 = vmatprep.subr.bf16.mxu0 0
    %355 = vmatpush1.bf16.msra.mxu0 0
    %356 = vmatprep.subr.bf16.mxu0 0
    %357 = vmatpush1.bf16.msra.mxu0 0
    %358 = vmatprep.subr.bf16.mxu0 0
    %359 = vmatpush1.bf16.msra.mxu0 0
    %360 = vmatprep.subr.bf16.mxu0 0
    %361 = vmatpush1.bf16.msra.mxu0 0
    %362 = vmatprep.subr.bf16.mxu0 0
    %363 = vmatpush1.bf16.msra.mxu0 0
    %364 = vmatprep.mubr.bf16.mxu0 0
    %365 = vmatmul.mubr.bf16.gmra.mrb[0].mxu0 %v252
    %v366 = vpop.f32.mrb[0].mxu0
    %v367 = vadd.f32 0.0, %v366
    %v368 = vpop.f32.mrb[0].mxu0
    %v369 = vpop.f32.mrb[0].mxu0
    %v370 = vadd.f32 0.0, %v369
    %v371 = vpop.f32.mrb[0].mxu0
    %372 = vmatprep.mubr.bf16.mxu0 0
    %373 = vmatmul.mubr.bf16.gmra.mrb[0].mxu0 %v253
    %v374 = vpop.f32.mrb[0].mxu0
    %v375 = vadd.f32 0.0, %v374
    %v376 = vpop.f32.mrb[0].mxu0
    %v377 = vpop.f32.mrb[0].mxu0
    %v378 = vadd.f32 0.0, %v377
    %v379 = vpop.f32.mrb[0].mxu0
    %380 = vmatprep.mubr.bf16.mxu0 0
    %381 = vmatmul.mubr.bf16.gmra.mrb[0].mxu0 %v254
    %v382 = vpop.f32.mrb[0].mxu0
    %v383 = vadd.f32 0.0, %v382
    %v384 = vpop.f32.mrb[0].mxu0
    %v385 = vpop.f32.mrb[0].mxu0
    %v386 = vadd.f32 0.0, %v385
    %v387 = vpop.f32.mrb[0].mxu0
    %388 = vmatprep.mubr.bf16.mxu0 0
    %389 = vmatmul.mubr.bf16.gmra.mrb[0].mxu0 %v255
    %v390 = vpop.f32.mrb[0].mxu0
    %v391 = vadd.f32 0.0, %v390
    %v392 = vpop.f32.mrb[0].mxu0
    %v393 = vpop.f32.mrb[0].mxu0
    %v394 = vadd.f32 0.0, %v393
    %v395 = vpop.f32.mrb[0].mxu0
    %396 = vmatprep.mubr.bf16.mxu0 0
    %397 = vmatmul.mubr.bf16.gmra.mrb[0].mxu0 %v256
    %v398 = vpop.f32.mrb[0].mxu0
    %v399 = vadd.f32 0.0, %v398
    %v400 = vpop.f32.mrb[0].mxu0
    %v401 = vpop.f32.mrb[0].mxu0
    %v402 = vadd.f32 0.0, %v401
    %v403 = vpop.f32.mrb[0].mxu0
    %404 = vmatprep.mubr.bf16.mxu0 0
    %405 = vmatmul.mubr.bf16.gmra.mrb[0].mxu0 %v257
    %v406 = vpop.f32.mrb[0].mxu0
    %v407 = vadd.f32 0.0, %v406
    %v408 = vpop.f32.mrb[0].mxu0
    %v409 = vpop.f32.mrb[0].mxu0
    %v410 = vadd.f32 0.0, %v409
    %v411 = vpop.f32.mrb[0].mxu0
    %412 = vmatprep.mubr.bf16.mxu0 0
    %413 = vmatmul.mubr.bf16.gmra.mrb[0].mxu0 %v258
    %v414 = vpop.f32.mrb[0].mxu0
    %v415 = vadd.f32 0.0, %v414
    %v416 = vpop.f32.mrb[0].mxu0
    %v417 = vpop.f32.mrb[0].mxu0
    %v418 = vadd.f32 0.0, %v417
    %v419 = vpop.f32.mrb[0].mxu0
    %420 = vmatprep.mubr.bf16.mxu0 0
    %421 = vmatmul.mubr.bf16.gmra.mrb[0].mxu0 %v259
    %v422 = vpop.f32.mrb[0].mxu0
    %v423 = vadd.f32 0.0, %v422
    %v424 = vpop.f32.mrb[0].mxu0
    %v425 = vpop.f32.mrb[0].mxu0
    %v426 = vadd.f32 0.0, %v425
    %v427 = vpop.f32.mrb[0].mxu0
    %428 = vmatprep.mubr.bf16.mxu0 0
    %429 = vmatmul.mubr.bf16.gmra.mrb[0].mxu0 %v260
    %v430 = vpop.f32.mrb[0].mxu0
    %v431 = vadd.f32 0.0, %v430
    %v432 = vpop.f32.mrb[0].mxu0
    %v433 = vpop.f32.mrb[0].mxu0
    %v434 = vadd.f32 0.0, %v433
    %v435 = vpop.f32.mrb[0].mxu0
    %436 = vmatprep.mubr.bf16.mxu0 0
    %437 = vmatmul.mubr.bf16.gmra.mrb[0].mxu0 %v261
    %v438 = vpop.f32.mrb[0].mxu0
    %v439 = vadd.f32 0.0, %v438
    %v440 = vpop.f32.mrb[0].mxu0
    %v441 = vpop.f32.mrb[0].mxu0
    %v442 = vadd.f32 0.0, %v441
    %v443 = vpop.f32.mrb[0].mxu0
    %444 = vmatprep.mubr.bf16.mxu0 0
    %445 = vmatmul.mubr.bf16.gmra.mrb[0].mxu0 %v262
    %v446 = vpop.f32.mrb[0].mxu0
    %v447 = vadd.f32 0.0, %v446
    %v448 = vpop.f32.mrb[0].mxu0
    %v449 = vpop.f32.mrb[0].mxu0
    %v450 = vadd.f32 0.0, %v449
    %v451 = vpop.f32.mrb[0].mxu0
    %452 = vmatprep.mubr.bf16.mxu0 0
    %453 = vmatmul.mubr.bf16.gmra.mrb[0].mxu0 %v263
    %v454 = vpop.f32.mrb[0].mxu0
    %v455 = vadd.f32 0.0, %v454
    %v456 = vpop.f32.mrb[0].mxu0
    %v457 = vpop.f32.mrb[0].mxu0
    %v458 = vadd.f32 0.0, %v457
    %v459 = vpop.f32.mrb[0].mxu0
    %460 = vmatprep.mubr.bf16.mxu0 0
    %461 = vmatmul.mubr.bf16.gmra.mrb[0].mxu0 %v264
    %v462 = vpop.f32.mrb[0].mxu0
    %v463 = vadd.f32 0.0, %v462
    %v464 = vpop.f32.mrb[0].mxu0
    %v465 = vpop.f32.mrb[0].mxu0
    %v466 = vadd.f32 0.0, %v465
    %v467 = vpop.f32.mrb[0].mxu0
    %468 = vmatprep.mubr.bf16.mxu0 0
    %469 = vmatmul.mubr.bf16.gmra.mrb[0].mxu0 %v265
    %v470 = vpop.f32.mrb[0].mxu0
    %v471 = vadd.f32 0.0, %v470
    %v472 = vpop.f32.mrb[0].mxu0
    %v473 = vpop.f32.mrb[0].mxu0
    %v474 = vadd.f32 0.0, %v473
    %v475 = vpop.f32.mrb[0].mxu0
    %476 = vmatprep.mubr.bf16.mxu0 0
    %477 = vmatmul.mubr.bf16.gmra.mrb[0].mxu0 %v266
    %v478 = vpop.f32.mrb[0].mxu0
    %v479 = vadd.f32 0.0, %v478
    %v480 = vpop.f32.mrb[0].mxu0
    %v481 = vpop.f32.mrb[0].mxu0
    %v482 = vadd.f32 0.0, %v481
    %v483 = vpop.f32.mrb[0].mxu0
    %484 = vmatprep.mubr.bf16.mxu0 0
    %485 = vmatmul.mubr.bf16.gmra.mrb[0].mxu0 %v267
    %v486 = vpop.f32.mrb[0].mxu0
    %v487 = vadd.f32 0.0, %v486
    %v488 = vpop.f32.mrb[0].mxu0
    %v489 = vpop.f32.mrb[0].mxu0
    %v490 = vadd.f32 0.0, %v489
    %v491 = vpop.f32.mrb[0].mxu0
    %492 = vdwg.mxu0
    %v493 = vadd.f32 %v156, %v367
    %v494 = vadd.f32 %v157, %v370
    %v495 = vadd.f32 %v158, %v375
    %v496 = vadd.f32 %v159, %v378
    %v497 = vadd.f32 %v160, %v383
    %v498 = vadd.f32 %v161, %v386
    %v499 = vadd.f32 %v162, %v391
    %v500 = vadd.f32 %v163, %v394
    %v501 = vadd.f32 %v164, %v399
    %v502 = vadd.f32 %v165, %v402
    %v503 = vadd.f32 %v166, %v407
    %v504 = vadd.f32 %v167, %v410
    %v505 = vadd.f32 %v168, %v415
    %v506 = vadd.f32 %v169, %v418
    %v507 = vadd.f32 %v170, %v423
    %v508 = vadd.f32 %v171, %v426
    %v509 = vadd.f32 %v172, %v431
    %v510 = vadd.f32 %v173, %v434
    %v511 = vadd.f32 %v174, %v439
    %v512 = vadd.f32 %v175, %v442
    %v513 = vadd.f32 %v176, %v447
    %v514 = vadd.f32 %v177, %v450
    %v515 = vadd.f32 %v178, %v455
    %v516 = vadd.f32 %v179, %v458
    %v517 = vadd.f32 %v180, %v463
    %v518 = vadd.f32 %v181, %v466
    %v519 = vadd.f32 %v182, %v471
    %v520 = vadd.f32 %v183, %v474
    %v521 = vadd.f32 %v184, %v479
    %v522 = vadd.f32 %v185, %v482
    %v523 = vadd.f32 %v186, %v487
    %v524 = vadd.f32 %v187, %v490
    %525 = vst [vmem:[#allocation2] sm:$0xff] %v493
    %526 = vst [vmem:[#allocation2 + $0x8] sm:$0xff] %v494
    %527 = vst [vmem:[#allocation2 + $0x10] sm:$0xff] %v495
    %528 = vst [vmem:[#allocation2 + $0x18] sm:$0xff] %v496
    %529 = vst [vmem:[#allocation2 + $0x20] sm:$0xff] %v497
    %530 = vst [vmem:[#allocation2 + $0x28] sm:$0xff] %v498
    %531 = vst [vmem:[#allocation2 + $0x30] sm:$0xff] %v499
    %532 = vst [vmem:[#allocation2 + $0x38] sm:$0xff] %v500
    %533 = vst [vmem:[#allocation2 + $0x40] sm:$0xff] %v501
    %534 = vst [vmem:[#allocation2 + $0x48] sm:$0xff] %v502
    %535 = vst [vmem:[#allocation2 + $0x50] sm:$0xff] %v503
    %536 = vst [vmem:[#allocation2 + $0x58] sm:$0xff] %v504
    %537 = vst [vmem:[#allocation2 + $0x60] sm:$0xff] %v505
    %538 = vst [vmem:[#allocation2 + $0x68] sm:$0xff] %v506
    %539 = vst [vmem:[#allocation2 + $0x70] sm:$0xff] %v507
    %540 = vst [vmem:[#allocation2 + $0x78] sm:$0xff] %v508
    %541 = vst [vmem:[#allocation2 + $0x80] sm:$0xff] %v509
    %542 = vst [vmem:[#allocation2 + $0x88] sm:$0xff] %v510
    %543 = vst [vmem:[#allocation2 + $0x90] sm:$0xff] %v511
    %544 = vst [vmem:[#allocation2 + $0x98] sm:$0xff] %v512
    %545 = vst [vmem:[#allocation2 + $0xa0] sm:$0xff] %v513
    %546 = vst [vmem:[#allocation2 + $0xa8] sm:$0xff] %v514
    %547 = vst [vmem:[#allocation2 + $0xb0] sm:$0xff] %v515
    %548 = vst [vmem:[#allocation2 + $0xb8] sm:$0xff] %v516
    %549 = vst [vmem:[#allocation2 + $0xc0] sm:$0xff] %v517
    %550 = vst [vmem:[#allocation2 + $0xc8] sm:$0xff] %v518
    %551 = vst [vmem:[#allocation2 + $0xd0] sm:$0xff] %v519
    %552 = vst [vmem:[#allocation2 + $0xd8] sm:$0xff] %v520
    %553 = vst [vmem:[#allocation2 + $0xe0] sm:$0xff] %v521
    %554 = vst [vmem:[#allocation2 + $0xe8] sm:$0xff] %v522
    %555 = vst [vmem:[#allocation2 + $0xf0] sm:$0xff] %v523
    %556 = vst [vmem:[#allocation2 + $0xf8] sm:$0xff] %v524
    // Predicated region
    $region38: #{tpu_custom_call.1} parent=1 // pred_check
      %p557 = pneg %p72
    $region39: #{tpu_custom_call.1} parent=1 // pred_check_branch
      %559 = sbr.rel (%p557) target = $region41
    $region40: #{tpu_custom_call.1} parent=1 // pred_region
      %v560 = vld [vmem:[#allocation8] sm:$0xff]
      %v561 = vld [vmem:[#allocation8 + $0x8] sm:$0xff]
      %v562 = vld [vmem:[#allocation8 + $0x10] sm:$0xff]
      %v563 = vld [vmem:[#allocation8 + $0x18] sm:$0xff]
      %v564 = vld [vmem:[#allocation8 + $0x20] sm:$0xff]
      %v565 = vld [vmem:[#allocation8 + $0x28] sm:$0xff]
      %v566 = vld [vmem:[#allocation8 + $0x30] sm:$0xff]
      %v567 = vld [vmem:[#allocation8 + $0x38] sm:$0xff]
      %v568 = vld [vmem:[#allocation8 + $0x40] sm:$0xff]
      %v569 = vld [vmem:[#allocation8 + $0x48] sm:$0xff]
      %v570 = vld [vmem:[#allocation8 + $0x50] sm:$0xff]
      %v571 = vld [vmem:[#allocation8 + $0x58] sm:$0xff]
      %v572 = vld [vmem:[#allocation8 + $0x60] sm:$0xff]
      %v573 = vld [vmem:[#allocation8 + $0x68] sm:$0xff]
      %v574 = vld [vmem:[#allocation8 + $0x70] sm:$0xff]
      %v575 = vld [vmem:[#allocation8 + $0x78] sm:$0xff]
      %v576 = vld [vmem:[#allocation8 + $0x80] sm:$0xff]
      %v577 = vld [vmem:[#allocation8 + $0x88] sm:$0xff]
      %v578 = vld [vmem:[#allocation8 + $0x90] sm:$0xff]
      %v579 = vld [vmem:[#allocation8 + $0x98] sm:$0xff]
      %v580 = vld [vmem:[#allocation8 + $0xa0] sm:$0xff]
      %v581 = vld [vmem:[#allocation8 + $0xa8] sm:$0xff]
      %v582 = vld [vmem:[#allocation8 + $0xb0] sm:$0xff]
      %v583 = vld [vmem:[#allocation8 + $0xb8] sm:$0xff]
      %v584 = vld [vmem:[#allocation8 + $0xc0] sm:$0xff]
      %v585 = vld [vmem:[#allocation8 + $0xc8] sm:$0xff]
      %v586 = vld [vmem:[#allocation8 + $0xd0] sm:$0xff]
      %v587 = vld [vmem:[#allocation8 + $0xd8] sm:$0xff]
      %v588 = vld [vmem:[#allocation8 + $0xe0] sm:$0xff]
      %v589 = vld [vmem:[#allocation8 + $0xe8] sm:$0xff]
      %v590 = vld [vmem:[#allocation8 + $0xf0] sm:$0xff]
      %v591 = vld [vmem:[#allocation8 + $0xf8] sm:$0xff]
      %v592 = vld [vmem:[#allocation2] sm:$0xff]
      %v593 = vld [vmem:[#allocation2 + $0x8] sm:$0xff]
      %v594 = vld [vmem:[#allocation2 + $0x10] sm:$0xff]
      %v595 = vld [vmem:[#allocation2 + $0x18] sm:$0xff]
      %v596 = vld [vmem:[#allocation2 + $0x20] sm:$0xff]
      %v597 = vld [vmem:[#allocation2 + $0x28] sm:$0xff]
      %v598 = vld [vmem:[#allocation2 + $0x30] sm:$0xff]
      %v599 = vld [vmem:[#allocation2 + $0x38] sm:$0xff]
      %v600 = vld [vmem:[#allocation2 + $0x40] sm:$0xff]
      %v601 = vld [vmem:[#allocation2 + $0x48] sm:$0xff]
      %v602 = vld [vmem:[#allocation2 + $0x50] sm:$0xff]
      %v603 = vld [vmem:[#allocation2 + $0x58] sm:$0xff]
      %v604 = vld [vmem:[#allocation2 + $0x60] sm:$0xff]
      %v605 = vld [vmem:[#allocation2 + $0x68] sm:$0xff]
      %v606 = vld [vmem:[#allocation2 + $0x70] sm:$0xff]
      %v607 = vld [vmem:[#allocation2 + $0x78] sm:$0xff]
      %v608 = vld [vmem:[#allocation2 + $0x80] sm:$0xff]
      %v609 = vld [vmem:[#allocation2 + $0x88] sm:$0xff]
      %v610 = vld [vmem:[#allocation2 + $0x90] sm:$0xff]
      %v611 = vld [vmem:[#allocation2 + $0x98] sm:$0xff]
      %v612 = vld [vmem:[#allocation2 + $0xa0] sm:$0xff]
      %v613 = vld [vmem:[#allocation2 + $0xa8] sm:$0xff]
      %v614 = vld [vmem:[#allocation2 + $0xb0] sm:$0xff]
      %v615 = vld [vmem:[#allocation2 + $0xb8] sm:$0xff]
      %v616 = vld [vmem:[#allocation2 + $0xc0] sm:$0xff]
      %v617 = vld [vmem:[#allocation2 + $0xc8] sm:$0xff]
      %v618 = vld [vmem:[#allocation2 + $0xd0] sm:$0xff]
      %v619 = vld [vmem:[#allocation2 + $0xd8] sm:$0xff]
      %v620 = vld [vmem:[#allocation2 + $0xe0] sm:$0xff]
      %v621 = vld [vmem:[#allocation2 + $0xe8] sm:$0xff]
      %v622 = vld [vmem:[#allocation2 + $0xf0] sm:$0xff]
      %v623 = vld [vmem:[#allocation2 + $0xf8] sm:$0xff]
      %625 = vset.pattern.permute.xlu0 0
      %626 = vperm.xlu0 %625, %v560
      %v627 = vpop.permute.xlu0 %626
      %630 = vset.pattern.permute.xlu0 0
      %631 = vperm.xlu0 %630, %v561
      %v632 = vpop.permute.xlu0 %631
      %635 = vset.pattern.permute.xlu0 0
      %636 = vperm.xlu0 %635, %v562
      %v637 = vpop.permute.xlu0 %636
      %640 = vset.pattern.permute.xlu0 0
      %641 = vperm.xlu0 %640, %v563
      %v642 = vpop.permute.xlu0 %641
      %645 = vset.pattern.permute.xlu0 0
      %646 = vperm.xlu0 %645, %v564
      %v647 = vpop.permute.xlu0 %646
      %650 = vset.pattern.permute.xlu0 0
      %651 = vperm.xlu0 %650, %v565
      %v652 = vpop.permute.xlu0 %651
      %655 = vset.pattern.permute.xlu0 0
      %656 = vperm.xlu0 %655, %v566
      %v657 = vpop.permute.xlu0 %656
      %660 = vset.pattern.permute.xlu0 0
      %661 = vperm.xlu0 %660, %v567
      %v662 = vpop.permute.xlu0 %661
      %665 = vset.pattern.permute.xlu0 0
      %666 = vperm.xlu0 %665, %v568
      %v667 = vpop.permute.xlu0 %666
      %670 = vset.pattern.permute.xlu0 0
      %671 = vperm.xlu0 %670, %v569
      %v672 = vpop.permute.xlu0 %671
      %675 = vset.pattern.permute.xlu0 0
      %676 = vperm.xlu0 %675, %v570
      %v677 = vpop.permute.xlu0 %676
      %680 = vset.pattern.permute.xlu0 0
      %681 = vperm.xlu0 %680, %v571
      %v682 = vpop.permute.xlu0 %681
      %685 = vset.pattern.permute.xlu0 0
      %686 = vperm.xlu0 %685, %v572
      %v687 = vpop.permute.xlu0 %686
      %690 = vset.pattern.permute.xlu0 0
      %691 = vperm.xlu0 %690, %v573
      %v692 = vpop.permute.xlu0 %691
      %695 = vset.pattern.permute.xlu0 0
      %696 = vperm.xlu0 %695, %v574
      %v697 = vpop.permute.xlu0 %696
      %700 = vset.pattern.permute.xlu0 0
      %701 = vperm.xlu0 %700, %v575
      %v702 = vpop.permute.xlu0 %701
      %705 = vset.pattern.permute.xlu0 0
      %706 = vperm.xlu0 %705, %v576
      %v707 = vpop.permute.xlu0 %706
      %710 = vset.pattern.permute.xlu0 0
      %711 = vperm.xlu0 %710, %v577
      %v712 = vpop.permute.xlu0 %711
      %715 = vset.pattern.permute.xlu0 0
      %716 = vperm.xlu0 %715, %v578
      %v717 = vpop.permute.xlu0 %716
      %720 = vset.pattern.permute.xlu0 0
      %721 = vperm.xlu0 %720, %v579
      %v722 = vpop.permute.xlu0 %721
      %725 = vset.pattern.permute.xlu0 0
      %726 = vperm.xlu0 %725, %v580
      %v727 = vpop.permute.xlu0 %726
      %730 = vset.pattern.permute.xlu0 0
      %731 = vperm.xlu0 %730, %v581
      %v732 = vpop.permute.xlu0 %731
      %735 = vset.pattern.permute.xlu0 0
      %736 = vperm.xlu0 %735, %v582
      %v737 = vpop.permute.xlu0 %736
      %740 = vset.pattern.permute.xlu0 0
      %741 = vperm.xlu0 %740, %v583
      %v742 = vpop.permute.xlu0 %741
      %745 = vset.pattern.permute.xlu0 0
      %746 = vperm.xlu0 %745, %v584
      %v747 = vpop.permute.xlu0 %746
      %750 = vset.pattern.permute.xlu0 0
      %751 = vperm.xlu0 %750, %v585
      %v752 = vpop.permute.xlu0 %751
      %755 = vset.pattern.permute.xlu0 0
      %756 = vperm.xlu0 %755, %v586
      %v757 = vpop.permute.xlu0 %756
      %760 = vset.pattern.permute.xlu0 0
      %761 = vperm.xlu0 %760, %v587
      %v762 = vpop.permute.xlu0 %761
      %765 = vset.pattern.permute.xlu0 0
      %766 = vperm.xlu0 %765, %v588
      %v767 = vpop.permute.xlu0 %766
      %770 = vset.pattern.permute.xlu0 0
      %771 = vperm.xlu0 %770, %v589
      %v772 = vpop.permute.xlu0 %771
      %775 = vset.pattern.permute.xlu0 0
      %776 = vperm.xlu0 %775, %v590
      %v777 = vpop.permute.xlu0 %776
      %780 = vset.pattern.permute.xlu0 0
      %781 = vperm.xlu0 %780, %v591
      %v782 = vpop.permute.xlu0 %781
      %v784 = vmul.f32 %v592, %v627
      %v785 = vmul.f32 %v593, %v632
      %v786 = vmul.f32 %v594, %v637
      %v787 = vmul.f32 %v595, %v642
      %v788 = vmul.f32 %v596, %v647
      %v789 = vmul.f32 %v597, %v652
      %v790 = vmul.f32 %v598, %v657
      %v791 = vmul.f32 %v599, %v662
      %v792 = vmul.f32 %v600, %v667
      %v793 = vmul.f32 %v601, %v672
      %v794 = vmul.f32 %v602, %v677
      %v795 = vmul.f32 %v603, %v682
      %v796 = vmul.f32 %v604, %v687
      %v797 = vmul.f32 %v605, %v692
      %v798 = vmul.f32 %v606, %v697
      %v799 = vmul.f32 %v607, %v702
      %v800 = vmul.f32 %v608, %v707
      %v801 = vmul.f32 %v609, %v712
      %v802 = vmul.f32 %v610, %v717
      %v803 = vmul.f32 %v611, %v722
      %v804 = vmul.f32 %v612, %v727
      %v805 = vmul.f32 %v613, %v732
      %v806 = vmul.f32 %v614, %v737
      %v807 = vmul.f32 %v615, %v742
      %v808 = vmul.f32 %v616, %v747
      %v809 = vmul.f32 %v617, %v752
      %v810 = vmul.f32 %v618, %v757
      %v811 = vmul.f32 %v619, %v762
      %v812 = vmul.f32 %v620, %v767
      %v813 = vmul.f32 %v621, %v772
      %v814 = vmul.f32 %v622, %v777
      %v815 = vmul.f32 %v623, %v782
      %v816 = vld [vmem:[#allocation9] sm:$0x1]
      %vm817 = vcmp.gt.f32.partialorder %v560, 0.0
      %vm818 = vcmp.gt.f32.partialorder %v561, 0.0
      %vm819 = vcmp.gt.f32.partialorder %v562, 0.0
      %vm820 = vcmp.gt.f32.partialorder %v563, 0.0
      %vm821 = vcmp.gt.f32.partialorder %v564, 0.0
      %vm822 = vcmp.gt.f32.partialorder %v565, 0.0
      %vm823 = vcmp.gt.f32.partialorder %v566, 0.0
      %vm824 = vcmp.gt.f32.partialorder %v567, 0.0
      %vm825 = vcmp.gt.f32.partialorder %v568, 0.0
      %vm826 = vcmp.gt.f32.partialorder %v569, 0.0
      %vm827 = vcmp.gt.f32.partialorder %v570, 0.0
      %vm828 = vcmp.gt.f32.partialorder %v571, 0.0
      %vm829 = vcmp.gt.f32.partialorder %v572, 0.0
      %vm830 = vcmp.gt.f32.partialorder %v573, 0.0
      %vm831 = vcmp.gt.f32.partialorder %v574, 0.0
      %vm832 = vcmp.gt.f32.partialorder %v575, 0.0
      %vm833 = vcmp.gt.f32.partialorder %v576, 0.0
      %vm834 = vcmp.gt.f32.partialorder %v577, 0.0
      %vm835 = vcmp.gt.f32.partialorder %v578, 0.0
      %vm836 = vcmp.gt.f32.partialorder %v579, 0.0
      %vm837 = vcmp.gt.f32.partialorder %v580, 0.0
      %vm838 = vcmp.gt.f32.partialorder %v581, 0.0
      %vm839 = vcmp.gt.f32.partialorder %v582, 0.0
      %vm840 = vcmp.gt.f32.partialorder %v583, 0.0
      %vm841 = vcmp.gt.f32.partialorder %v584, 0.0
      %vm842 = vcmp.gt.f32.partialorder %v585, 0.0
      %vm843 = vcmp.gt.f32.partialorder %v586, 0.0
      %vm844 = vcmp.gt.f32.partialorder %v587, 0.0
      %vm845 = vcmp.gt.f32.partialorder %v588, 0.0
      %vm846 = vcmp.gt.f32.partialorder %v589, 0.0
      %vm847 = vcmp.gt.f32.partialorder %v590, 0.0
      %vm848 = vcmp.gt.f32.partialorder %v591, 0.0
      %v849 = vsel %vm817, 1, 0
      %v850 = vsel %vm818, 1, 0
      %v851 = vsel %vm819, 1, 0
      %v852 = vsel %vm820, 1, 0
      %v853 = vsel %vm821, 1, 0
      %v854 = vsel %vm822, 1, 0
      %v855 = vsel %vm823, 1, 0
      %v856 = vsel %vm824, 1, 0
      %v857 = vsel %vm825, 1, 0
      %v858 = vsel %vm826, 1, 0
      %v859 = vsel %vm827, 1, 0
      %v860 = vsel %vm828, 1, 0
      %v861 = vsel %vm829, 1, 0
      %v862 = vsel %vm830, 1, 0
      %v863 = vsel %vm831, 1, 0
      %v864 = vsel %vm832, 1, 0
      %v865 = vsel %vm833, 1, 0
      %v866 = vsel %vm834, 1, 0
      %v867 = vsel %vm835, 1, 0
      %v868 = vsel %vm836, 1, 0
      %v869 = vsel %vm837, 1, 0
      %v870 = vsel %vm838, 1, 0
      %v871 = vsel %vm839, 1, 0
      %v872 = vsel %vm840, 1, 0
      %v873 = vsel %vm841, 1, 0
      %v874 = vsel %vm842, 1, 0
      %v875 = vsel %vm843, 1, 0
      %v876 = vsel %vm844, 1, 0
      %v877 = vsel %vm845, 1, 0
      %v878 = vsel %vm846, 1, 0
      %v879 = vsel %vm847, 1, 0
      %v880 = vsel %vm848, 1, 0
      %v881 = vcvt.s32.f32 %v849
      %v882 = vcvt.s32.f32 %v850
      %v883 = vcvt.s32.f32 %v851
      %v884 = vcvt.s32.f32 %v852
      %v885 = vcvt.s32.f32 %v853
      %v886 = vcvt.s32.f32 %v854
      %v887 = vcvt.s32.f32 %v855
      %v888 = vcvt.s32.f32 %v856
      %v889 = vcvt.s32.f32 %v857
      %v890 = vcvt.s32.f32 %v858
      %v891 = vcvt.s32.f32 %v859
      %v892 = vcvt.s32.f32 %v860
      %v893 = vcvt.s32.f32 %v861
      %v894 = vcvt.s32.f32 %v862
      %v895 = vcvt.s32.f32 %v863
      %v896 = vcvt.s32.f32 %v864
      %v897 = vcvt.s32.f32 %v865
      %v898 = vcvt.s32.f32 %v866
      %v899 = vcvt.s32.f32 %v867
      %v900 = vcvt.s32.f32 %v868
      %v901 = vcvt.s32.f32 %v869
      %v902 = vcvt.s32.f32 %v870
      %v903 = vcvt.s32.f32 %v871
      %v904 = vcvt.s32.f32 %v872
      %v905 = vcvt.s32.f32 %v873
      %v906 = vcvt.s32.f32 %v874
      %v907 = vcvt.s32.f32 %v875
      %v908 = vcvt.s32.f32 %v876
      %v909 = vcvt.s32.f32 %v877
      %v910 = vcvt.s32.f32 %v878
      %v911 = vcvt.s32.f32 %v879
      %v912 = vcvt.s32.f32 %v880
      %v914 = vlaneseq
      %v915 = vshrl.u32 %v914, 7
      %v916 = vsub.s32 0, %v915
      %v917 = vrot.slane %v816, %v916
      %920 = vset.pattern.permute.xlu0 0
      %921 = vperm.xlu0 %920, %v881
      %v922 = vpop.permute.xlu0 %921
      %925 = vset.pattern.permute.xlu0 0
      %926 = vperm.xlu0 %925, %v882
      %v927 = vpop.permute.xlu0 %926
      %930 = vset.pattern.permute.xlu0 0
      %931 = vperm.xlu0 %930, %v883
      %v932 = vpop.permute.xlu0 %931
      %935 = vset.pattern.permute.xlu0 0
      %936 = vperm.xlu0 %935, %v884
      %v937 = vpop.permute.xlu0 %936
      %940 = vset.pattern.permute.xlu0 0
      %941 = vperm.xlu0 %940, %v885
      %v942 = vpop.permute.xlu0 %941
      %945 = vset.pattern.permute.xlu0 0
      %946 = vperm.xlu0 %945, %v886
      %v947 = vpop.permute.xlu0 %946
      %950 = vset.pattern.permute.xlu0 0
      %951 = vperm.xlu0 %950, %v887
      %v952 = vpop.permute.xlu0 %951
      %955 = vset.pattern.permute.xlu0 0
      %956 = vperm.xlu0 %955, %v888
      %v957 = vpop.permute.xlu0 %956
      %960 = vset.pattern.permute.xlu0 0
      %961 = vperm.xlu0 %960, %v889
      %v962 = vpop.permute.xlu0 %961
      %965 = vset.pattern.permute.xlu0 0
      %966 = vperm.xlu0 %965, %v890
      %v967 = vpop.permute.xlu0 %966
      %970 = vset.pattern.permute.xlu0 0
      %971 = vperm.xlu0 %970, %v891
      %v972 = vpop.permute.xlu0 %971
      %975 = vset.pattern.permute.xlu0 0
      %976 = vperm.xlu0 %975, %v892
      %v977 = vpop.permute.xlu0 %976
      %980 = vset.pattern.permute.xlu0 0
      %981 = vperm.xlu0 %980, %v893
      %v982 = vpop.permute.xlu0 %981
      %985 = vset.pattern.permute.xlu0 0
      %986 = vperm.xlu0 %985, %v894
      %v987 = vpop.permute.xlu0 %986
      %990 = vset.pattern.permute.xlu0 0
      %991 = vperm.xlu0 %990, %v895
      %v992 = vpop.permute.xlu0 %991
      %995 = vset.pattern.permute.xlu0 0
      %996 = vperm.xlu0 %995, %v896
      %v997 = vpop.permute.xlu0 %996
      %1000 = vset.pattern.permute.xlu0 0
      %1001 = vperm.xlu0 %1000, %v897
      %v1002 = vpop.permute.xlu0 %1001
      %1005 = vset.pattern.permute.xlu0 0
      %1006 = vperm.xlu0 %1005, %v898
      %v1007 = vpop.permute.xlu0 %1006
      %1010 = vset.pattern.permute.xlu0 0
      %1011 = vperm.xlu0 %1010, %v899
      %v1012 = vpop.permute.xlu0 %1011
      %1015 = vset.pattern.permute.xlu0 0
      %1016 = vperm.xlu0 %1015, %v900
      %v1017 = vpop.permute.xlu0 %1016
      %1020 = vset.pattern.permute.xlu0 0
      %1021 = vperm.xlu0 %1020, %v901
      %v1022 = vpop.permute.xlu0 %1021
      %1025 = vset.pattern.permute.xlu0 0
      %1026 = vperm.xlu0 %1025, %v902
      %v1027 = vpop.permute.xlu0 %1026
      %1030 = vset.pattern.permute.xlu0 0
      %1031 = vperm.xlu0 %1030, %v903
      %v1032 = vpop.permute.xlu0 %1031
      %1035 = vset.pattern.permute.xlu0 0
      %1036 = vperm.xlu0 %1035, %v904
      %v1037 = vpop.permute.xlu0 %1036
      %1040 = vset.pattern.permute.xlu0 0
      %1041 = vperm.xlu0 %1040, %v905
      %v1042 = vpop.permute.xlu0 %1041
      %1045 = vset.pattern.permute.xlu0 0
      %1046 = vperm.xlu0 %1045, %v906
      %v1047 = vpop.permute.xlu0 %1046
      %1050 = vset.pattern.permute.xlu0 0
      %1051 = vperm.xlu0 %1050, %v907
      %v1052 = vpop.permute.xlu0 %1051
      %1055 = vset.pattern.permute.xlu0 0
      %1056 = vperm.xlu0 %1055, %v908
      %v1057 = vpop.permute.xlu0 %1056
      %1060 = vset.pattern.permute.xlu0 0
      %1061 = vperm.xlu0 %1060, %v909
      %v1062 = vpop.permute.xlu0 %1061
      %1065 = vset.pattern.permute.xlu0 0
      %1066 = vperm.xlu0 %1065, %v910
      %v1067 = vpop.permute.xlu0 %1066
      %1070 = vset.pattern.permute.xlu0 0
      %1071 = vperm.xlu0 %1070, %v911
      %v1072 = vpop.permute.xlu0 %1071
      %1075 = vset.pattern.permute.xlu0 0
      %1076 = vperm.xlu0 %1075, %v912
      %v1077 = vpop.permute.xlu0 %1076
      %v1079 = vmul.f32 %v917, %v922
      %v1080 = vmul.f32 %v917, %v927
      %v1081 = vmul.f32 %v917, %v932
      %v1082 = vmul.f32 %v917, %v937
      %v1083 = vmul.f32 %v917, %v942
      %v1084 = vmul.f32 %v917, %v947
      %v1085 = vmul.f32 %v917, %v952
      %v1086 = vmul.f32 %v917, %v957
      %v1087 = vmul.f32 %v917, %v962
      %v1088 = vmul.f32 %v917, %v967
      %v1089 = vmul.f32 %v917, %v972
      %v1090 = vmul.f32 %v917, %v977
      %v1091 = vmul.f32 %v917, %v982
      %v1092 = vmul.f32 %v917, %v987
      %v1093 = vmul.f32 %v917, %v992
      %v1094 = vmul.f32 %v917, %v997
      %v1095 = vmul.f32 %v917, %v1002
      %v1096 = vmul.f32 %v917, %v1007
      %v1097 = vmul.f32 %v917, %v1012
      %v1098 = vmul.f32 %v917, %v1017
      %v1099 = vmul.f32 %v917, %v1022
      %v1100 = vmul.f32 %v917, %v1027
      %v1101 = vmul.f32 %v917, %v1032
      %v1102 = vmul.f32 %v917, %v1037
      %v1103 = vmul.f32 %v917, %v1042
      %v1104 = vmul.f32 %v917, %v1047
      %v1105 = vmul.f32 %v917, %v1052
      %v1106 = vmul.f32 %v917, %v1057
      %v1107 = vmul.f32 %v917, %v1062
      %v1108 = vmul.f32 %v917, %v1067
      %v1109 = vmul.f32 %v917, %v1072
      %v1110 = vmul.f32 %v917, %v1077
      %v1111 = vadd.f32 %v784, %v1079
      %v1112 = vadd.f32 %v785, %v1080
      %v1113 = vadd.f32 %v786, %v1081
      %v1114 = vadd.f32 %v787, %v1082
      %v1115 = vadd.f32 %v788, %v1083
      %v1116 = vadd.f32 %v789, %v1084
      %v1117 = vadd.f32 %v790, %v1085
      %v1118 = vadd.f32 %v791, %v1086
      %v1119 = vadd.f32 %v792, %v1087
      %v1120 = vadd.f32 %v793, %v1088
      %v1121 = vadd.f32 %v794, %v1089
      %v1122 = vadd.f32 %v795, %v1090
      %v1123 = vadd.f32 %v796, %v1091
      %v1124 = vadd.f32 %v797, %v1092
      %v1125 = vadd.f32 %v798, %v1093
      %v1126 = vadd.f32 %v799, %v1094
      %v1127 = vadd.f32 %v800, %v1095
      %v1128 = vadd.f32 %v801, %v1096
      %v1129 = vadd.f32 %v802, %v1097
      %v1130 = vadd.f32 %v803, %v1098
      %v1131 = vadd.f32 %v804, %v1099
      %v1132 = vadd.f32 %v805, %v1100
      %v1133 = vadd.f32 %v806, %v1101
      %v1134 = vadd.f32 %v807, %v1102
      %v1135 = vadd.f32 %v808, %v1103
      %v1136 = vadd.f32 %v809, %v1104
      %v1137 = vadd.f32 %v810, %v1105
      %v1138 = vadd.f32 %v811, %v1106
      %v1139 = vadd.f32 %v812, %v1107
      %v1140 = vadd.f32 %v813, %v1108
      %v1141 = vadd.f32 %v814, %v1109
      %v1142 = vadd.f32 %v815, %v1110
      %v1143 = vpack.c.bf16 %v1112, %v1111
      %v1144 = vpack.c.bf16 %v1114, %v1113
      %v1145 = vpack.c.bf16 %v1116, %v1115
      %v1146 = vpack.c.bf16 %v1118, %v1117
      %v1147 = vpack.c.bf16 %v1120, %v1119
      %v1148 = vpack.c.bf16 %v1122, %v1121
      %v1149 = vpack.c.bf16 %v1124, %v1123
      %v1150 = vpack.c.bf16 %v1126, %v1125
      %v1151 = vpack.c.bf16 %v1128, %v1127
      %v1152 = vpack.c.bf16 %v1130, %v1129
      %v1153 = vpack.c.bf16 %v1132, %v1131
      %v1154 = vpack.c.bf16 %v1134, %v1133
      %v1155 = vpack.c.bf16 %v1136, %v1135
      %v1156 = vpack.c.bf16 %v1138, %v1137
      %v1157 = vpack.c.bf16 %v1140, %v1139
      %v1158 = vpack.c.bf16 %v1142, %v1141
      %v1175 = vunpack.c.l.b16 %v1143
      %v1176 = vunpack.c.h.b16 %v1143
      %v1177 = vunpack.c.l.b16 %v1144
      %v1178 = vunpack.c.h.b16 %v1144
      %v1179 = vunpack.c.l.b16 %v1145
      %v1180 = vunpack.c.h.b16 %v1145
      %v1181 = vunpack.c.l.b16 %v1146
      %v1182 = vunpack.c.h.b16 %v1146
      %v1183 = vunpack.c.l.b16 %v1147
      %v1184 = vunpack.c.h.b16 %v1147
      %v1185 = vunpack.c.l.b16 %v1148
      %v1186 = vunpack.c.h.b16 %v1148
      %v1187 = vunpack.c.l.b16 %v1149
      %v1188 = vunpack.c.h.b16 %v1149
      %v1189 = vunpack.c.l.b16 %v1150
      %v1190 = vunpack.c.h.b16 %v1150
      %v1191 = vunpack.c.l.b16 %v1151
      %v1192 = vunpack.c.h.b16 %v1151
      %v1193 = vunpack.c.l.b16 %v1152
      %v1194 = vunpack.c.h.b16 %v1152
      %v1195 = vunpack.c.l.b16 %v1153
      %v1196 = vunpack.c.h.b16 %v1153
      %v1197 = vunpack.c.l.b16 %v1154
      %v1198 = vunpack.c.h.b16 %v1154
      %v1199 = vunpack.c.l.b16 %v1155
      %v1200 = vunpack.c.h.b16 %v1155
      %v1201 = vunpack.c.l.b16 %v1156
      %v1202 = vunpack.c.h.b16 %v1156
      %v1203 = vunpack.c.l.b16 %v1157
      %v1204 = vunpack.c.h.b16 %v1157
      %v1205 = vunpack.c.l.b16 %v1158
      %v1206 = vunpack.c.h.b16 %v1158
      %v1207 = vpack.c.b16 %v1175, %v1175
      %v1208 = vpack.c.b16 %v1176, %v1176
      %v1209 = vpack.c.b16 %v1177, %v1177
      %v1210 = vpack.c.b16 %v1178, %v1178
      %v1211 = vpack.c.b16 %v1179, %v1179
      %v1212 = vpack.c.b16 %v1180, %v1180
      %v1213 = vpack.c.b16 %v1181, %v1181
      %v1214 = vpack.c.b16 %v1182, %v1182
      %v1215 = vpack.c.b16 %v1183, %v1183
      %v1216 = vpack.c.b16 %v1184, %v1184
      %v1217 = vpack.c.b16 %v1185, %v1185
      %v1218 = vpack.c.b16 %v1186, %v1186
      %v1219 = vpack.c.b16 %v1187, %v1187
      %v1220 = vpack.c.b16 %v1188, %v1188
      %v1221 = vpack.c.b16 %v1189, %v1189
      %v1222 = vpack.c.b16 %v1190, %v1190
      %v1223 = vpack.c.b16 %v1191, %v1191
      %v1224 = vpack.c.b16 %v1192, %v1192
      %v1225 = vpack.c.b16 %v1193, %v1193
      %v1226 = vpack.c.b16 %v1194, %v1194
      %v1227 = vpack.c.b16 %v1195, %v1195
      %v1228 = vpack.c.b16 %v1196, %v1196
      %v1229 = vpack.c.b16 %v1197, %v1197
      %v1230 = vpack.c.b16 %v1198, %v1198
      %v1231 = vpack.c.b16 %v1199, %v1199
      %v1232 = vpack.c.b16 %v1200, %v1200
      %v1233 = vpack.c.b16 %v1201, %v1201
      %v1234 = vpack.c.b16 %v1202, %v1202
      %v1235 = vpack.c.b16 %v1203, %v1203
      %v1236 = vpack.c.b16 %v1204, %v1204
      %v1237 = vpack.c.b16 %v1205, %v1205
      %v1238 = vpack.c.b16 %v1206, %v1206
      %1271 = vst [vmem:[#allocation11] sm:$0xf] %v1207
      %1272 = vst [vmem:[#allocation11 + $0x4] sm:$0xf] %v1208
      %1273 = vst [vmem:[#allocation11 + $0x8] sm:$0xf] %v1209
      %1274 = vst [vmem:[#allocation11 + $0xc] sm:$0xf] %v1210
      %1275 = vst [vmem:[#allocation11 + $0x10] sm:$0xf] %v1211
      %1276 = vst [vmem:[#allocation11 + $0x14] sm:$0xf] %v1212
      %1277 = vst [vmem:[#allocation11 + $0x18] sm:$0xf] %v1213
      %1278 = vst [vmem:[#allocation11 + $0x1c] sm:$0xf] %v1214
      %1279 = vst [vmem:[#allocation11 + $0x20] sm:$0xf] %v1215
      %1280 = vst [vmem:[#allocation11 + $0x24] sm:$0xf] %v1216
      %1281 = vst [vmem:[#allocation11 + $0x28] sm:$0xf] %v1217
      %1282 = vst [vmem:[#allocation11 + $0x2c] sm:$0xf] %v1218
      %1283 = vst [vmem:[#allocation11 + $0x30] sm:$0xf] %v1219
      %1284 = vst [vmem:[#allocation11 + $0x34] sm:$0xf] %v1220
      %1285 = vst [vmem:[#allocation11 + $0x38] sm:$0xf] %v1221
      %1286 = vst [vmem:[#allocation11 + $0x3c] sm:$0xf] %v1222
      %1287 = vst [vmem:[#allocation11 + $0x40] sm:$0xf] %v1223
      %1288 = vst [vmem:[#allocation11 + $0x44] sm:$0xf] %v1224
      %1289 = vst [vmem:[#allocation11 + $0x48] sm:$0xf] %v1225
      %1290 = vst [vmem:[#allocation11 + $0x4c] sm:$0xf] %v1226
      %1291 = vst [vmem:[#allocation11 + $0x50] sm:$0xf] %v1227
      %1292 = vst [vmem:[#allocation11 + $0x54] sm:$0xf] %v1228
      %1293 = vst [vmem:[#allocation11 + $0x58] sm:$0xf] %v1229
      %1294 = vst [vmem:[#allocation11 + $0x5c] sm:$0xf] %v1230
      %1295 = vst [vmem:[#allocation11 + $0x60] sm:$0xf] %v1231
      %1296 = vst [vmem:[#allocation11 + $0x64] sm:$0xf] %v1232
      %1297 = vst [vmem:[#allocation11 + $0x68] sm:$0xf] %v1233
      %1298 = vst [vmem:[#allocation11 + $0x6c] sm:$0xf] %v1234
      %1299 = vst [vmem:[#allocation11 + $0x70] sm:$0xf] %v1235
      %1300 = vst [vmem:[#allocation11 + $0x74] sm:$0xf] %v1236
      %1301 = vst [vmem:[#allocation11 + $0x78] sm:$0xf] %v1237
      %1302 = vst [vmem:[#allocation11 + $0x7c] sm:$0xf] %v1238
    $region41: #{tpu_custom_call.1} parent=1 // pred_fallthru
      _
    // Predicated region
    $region42: #{tpu_custom_call.1} parent=1 // pred_check
      _
    $region43: #{tpu_custom_call.1} parent=1 // pred_check_branch
      %1304 = sbr.rel (0) target = $region45
    $region44: #{tpu_custom_call.1} parent=1 // pred_region
      %s1306 = ssub.s32 2048, 2048
      %1307 = vsyncadd [#allocation5], %s1306
      %s1308 = sshll.u32 [#allocation11], 4
      %s1309 = int_to_ptr.vmem [resolvable:$true] %s1308
      %1314 = dma.vmem_to_hbm [thread:$0]  %s1309, 2048, %s4, [#allocation5], 64, 64, 4
    $region45: #{tpu_custom_call.1} parent=1 // pred_fallthru
      _
    // Predicated region
    $region46: #{tpu_custom_call.1} parent=1 // pred_check
      _
    $region47: #{tpu_custom_call.1} parent=1 // pred_check_branch
      %1316 = sbr.rel (0) target = $region49
    $region48: #{tpu_custom_call.1} parent=1 // pred_region
      %1317 = dma.done [#allocation5], 2048
    $region49: #{tpu_custom_call.1} parent=1 // pred_fallthru
      _
    %1318 = vsyncpa [#allocation4], 1
    %1319 = vsyncpa [#allocation7], 1
    %1320 = vsyncpa [#allocation10], 1
    %1321 = vsyncpa [#allocation5], 1

</llo_original>
